<compile_context>
chip_gen: v5e
topology: v5e:2x2
jax: 0.10.0
libtpu: 0.0.40
codegen_flags: <defaults>
</compile_context>

<pallas_src>
import functools

import jax
import jax.numpy as jnp
from jax import lax
from jax.experimental import pallas as pl
from jax.experimental.pallas import tpu as pltpu


def _um_loss_kernel(score_act_ref, score_bkg_ref, label_ref,
                    feat_act_ref, feat_bkg_ref, out_ref,
                    acc_act_ref, acc_bkg_ref,
                    *, alpha, beta, margin, total_t, tile_t, needs_mask,
                    inv_t, inv_b):
    t = pl.program_id(0)

    @pl.when(t == 0)
    def _init():
        acc_act_ref[...] = jnp.zeros_like(acc_act_ref)
        acc_bkg_ref[...] = jnp.zeros_like(acc_bkg_ref)

    # ---- streaming feature reduction: accumulate (B, D) sums over T tiles ----
    # Widen to f32 in-register only; accumulator scratch is f32.
    fa = feat_act_ref[...].astype(jnp.float32)            # [B, tile_t, D]
    fb = feat_bkg_ref[...].astype(jnp.float32)

    if needs_mask:
        # Zero out rows past the true T on the ragged last tile (cheap VALU
        # select, fully hidden under the DMA; avoids an HBM pad copy).
        row = lax.broadcasted_iota(jnp.int32, (1, tile_t, 1), 1) + t * tile_t
        valid = row < total_t
        fa = jnp.where(valid, fa, 0.0)
        fb = jnp.where(valid, fb, 0.0)

    acc_act_ref[...] += jnp.sum(fa, axis=1)
    acc_bkg_ref[...] += jnp.sum(fb, axis=1)

    @pl.when(t == pl.num_programs(0) - 1)
    def _finalize():
        # ---- loss_cls = BCE(score_act, normalized label), mean reduction ----
        # PyTorch nn.BCELoss clamps log terms at -100 for numerical stability.
        label = label_ref[...].astype(jnp.float32)                    # [B, C]
        label = label / jnp.sum(label, axis=1, keepdims=True)

        sa = score_act_ref[...].astype(jnp.float32)                   # [B, C]
        log_sa = jnp.maximum(jnp.log(sa), -100.0)
        log_1m_sa = jnp.maximum(jnp.log(1.0 - sa), -100.0)
        loss_cls = -jnp.mean(label * log_sa + (1.0 - label) * log_1m_sa)

        # ---- loss_be = BCE(score_bkg, uniform label 1/C), mean reduction ----
        num_classes = label.shape[1]
        label_bkg = jnp.float32(1.0 / num_classes)
        sb = score_bkg_ref[...].astype(jnp.float32)                   # [B, C]
        log_sb = jnp.maximum(jnp.log(sb), -100.0)
        log_1m_sb = jnp.maximum(jnp.log(1.0 - sb), -100.0)
        loss_be = -jnp.mean(label_bkg * log_sb + (1.0 - label_bkg) * log_1m_sb)

        # ---- UM term: hinge on L2 norm of the mean feature (from streamed sums)
        mean_a = acc_act_ref[...] * jnp.float32(inv_t)                 # [B, D]
        mean_b = acc_bkg_ref[...] * jnp.float32(inv_t)                 # [B, D]
        norm_act = jnp.sqrt(jnp.sum(mean_a * mean_a, axis=1, keepdims=True))
        norm_bkg = jnp.sqrt(jnp.sum(mean_b * mean_b, axis=1, keepdims=True))
        loss_act = jnp.maximum(jnp.float32(margin) - norm_act, 0.0)
        loss_um = jnp.sum((loss_act + norm_bkg) ** 2) * jnp.float32(inv_b)

        loss_total = (loss_cls + jnp.float32(alpha) * loss_um
                      + jnp.float32(beta) * loss_be)

        out_ref[0] = loss_cls
        out_ref[1] = loss_be
        out_ref[2] = loss_um
        out_ref[3] = loss_total


def um_loss(score_act, score_bkg, feat_act, feat_bkg, label,
            *, alpha=0.0005, beta=0.2, margin=100.0, tile_t=None):
    """Returns (loss_total, dict of losses), mirroring the PyTorch module."""
    B, T, D = feat_act.shape
    C = label.shape[1]
    feat_itemsize = jnp.dtype(feat_act.dtype).itemsize

    # Pick a T tile keeping each feature block ~<=4 MiB so that
    # 2 streams x 2 pipeline buffers stay ~16 MiB of VMEM.
    if tile_t is None:
        budget_bytes = 4 * 1024 * 1024
        tile_t = budget_bytes // max(1, B * D * feat_itemsize)
    tile_t = int(tile_t)
    if tile_t >= T:
        tile_t = T                                  # full dim: exempt from 8-align
    else:
        tile_t = max(8, (tile_t // 8) * 8)          # sublane-aligned tile
        if tile_t >= T:
            tile_t = T
    num_t = pl.cdiv(T, tile_t)
    needs_mask = (T % tile_t) != 0                  # ragged last tile -> mask in-kernel

    kernel = functools.partial(
        _um_loss_kernel,
        alpha=float(alpha), beta=float(beta), margin=float(margin),
        total_t=int(T), tile_t=int(tile_t), needs_mask=bool(needs_mask),
        inv_t=1.0 / float(T), inv_b=1.0 / float(B))

    # Tiny [B, C] tensors: constant block index => DMA'd once, resident.
    score_spec = pl.BlockSpec((B, C), lambda t: (0, 0))
    feat_spec = pl.BlockSpec((B, tile_t, D), lambda t: (0, t, 0))

    cost = pl.CostEstimate(
        flops=int(4 * B * T * D + 10 * B * C),
        transcendentals=int(4 * B * C + 2 * B),
        bytes_accessed=int(2 * B * T * D * feat_itemsize + 3 * B * C * 4 + 4 * 4))

    out = pl.pallas_call(
        kernel,
        out_shape=jax.ShapeDtypeStruct((4,), jnp.float32),
        grid_spec=pltpu.PrefetchScalarGridSpec(
            num_scalar_prefetch=0,
            grid=(num_t,),
            in_specs=[score_spec, score_spec, score_spec, feat_spec, feat_spec],
            out_specs=pl.BlockSpec(memory_space=pltpu.MemorySpace.SMEM),
            scratch_shapes=[pltpu.VMEM((B, D), jnp.float32),
                            pltpu.VMEM((B, D), jnp.float32)]),
        compiler_params=pltpu.CompilerParams(
            dimension_semantics=("arbitrary",),      # T is a reduction axis
            vmem_limit_bytes=32 * 1024 * 1024),
        cost_estimate=cost,
    )(score_act, score_bkg, label, feat_act, feat_bkg)

    losses = {
        'loss_cls': out[0],
        'loss_be': out[1],
        'loss_um': out[2],
        'loss_total': out[3],
    }
    return out[3], losses


def _reference(score_act, score_bkg, feat_act, feat_bkg, label,
               *, alpha, beta, margin):
    label = label / jnp.sum(label, axis=1, keepdims=True)
    loss_cls = -jnp.mean(label * jnp.maximum(jnp.log(score_act), -100.0)
                         + (1 - label) * jnp.maximum(jnp.log(1 - score_act), -100.0))
    lb = 1.0 / label.shape[1]
    loss_be = -jnp.mean(lb * jnp.maximum(jnp.log(score_bkg), -100.0)
                        + (1 - lb) * jnp.maximum(jnp.log(1 - score_bkg), -100.0))
    na = jnp.linalg.norm(jnp.mean(feat_act, axis=1), axis=1)
    nb = jnp.linalg.norm(jnp.mean(feat_bkg, axis=1), axis=1)
    la = jnp.maximum(margin - na, 0.0)
    loss_um = jnp.mean((la + nb) ** 2)
    loss_total = loss_cls + alpha * loss_um + beta * loss_be
    return loss_total, loss_cls, loss_be, loss_um


if __name__ == "__main__":
    # Deterministic hyper-parameters (the module has no learned weights).
    alpha, beta, margin = 0.0005, 0.2, 100.0

    # Small shapes; T=20 with tile_t=8 exercises a 3-step streaming grid with a
    # ragged (masked) last tile.
    B, C, T, D = 2, 4, 20, 32
    key = jax.random.PRNGKey(0)
    k1, k2, k3, k4, k5 = jax.random.split(key, 5)

    # Scores must lie in (0, 1) for BCE.
    score_act = jax.nn.sigmoid(jax.random.normal(k1, (B, C), jnp.float32))
    score_bkg = jax.nn.sigmoid(jax.random.normal(k2, (B, C), jnp.float32))
    feat_act = jax.random.normal(k3, (B, T, D), jnp.float32)
    feat_bkg = jax.random.normal(k4, (B, T, D), jnp.float32)
    # Multi-hot labels with at least one positive class per row.
    label = (jax.random.uniform(k5, (B, C)) > 0.5).astype(jnp.float32)
    label = label.at[:, 0].set(1.0)

    loss_total, losses = um_loss(score_act, score_bkg, feat_act, feat_bkg, label,
                                 alpha=alpha, beta=beta, margin=margin, tile_t=8)
    loss_total = jax.block_until_ready(loss_total)

    ref_total, ref_cls, ref_be, ref_um = _reference(
        score_act, score_bkg, feat_act, feat_bkg, label,
        alpha=alpha, beta=beta, margin=margin)
    assert jnp.allclose(losses['loss_cls'], ref_cls, rtol=1e-5, atol=1e-5)
    assert jnp.allclose(losses['loss_be'], ref_be, rtol=1e-5, atol=1e-5)
    assert jnp.allclose(losses['loss_um'], ref_um, rtol=1e-5, atol=1e-5)
    assert jnp.allclose(loss_total, ref_total, rtol=1e-5, atol=1e-5), (loss_total, ref_total)
    print("KERNEL_OK")
</pallas_src>

<mosaic_0001>
module attributes {stable_mosaic.version = 11 : i64} {
  func.func @_um_loss_kernel(%arg0: i32, %arg1: memref<2x4xf32, #tpu.memory_space<vmem>>, %arg2: memref<2x4xf32, #tpu.memory_space<vmem>>, %arg3: memref<2x4xf32, #tpu.memory_space<vmem>>, %arg4: memref<2x8x32xf32, #tpu.memory_space<vmem>>, %arg5: memref<2x8x32xf32, #tpu.memory_space<vmem>>, %arg6: memref<4xf32, #tpu.memory_space<smem>>, %arg7: memref<2x32xf32, #tpu.memory_space<vmem>>, %arg8: memref<2x32xf32, #tpu.memory_space<vmem>>) attributes {dimension_semantics = [#tpu.dimension_semantics<arbitrary>], iteration_bounds = array<i64: 3>, scalar_prefetch = 0 : i64, scratch_operands = 2 : i64, tpu.core_type = #tpu.core_type<tc>, window_params = [{pipeline_mode = #tpu.pipeline_mode<synchronous>, transform_indices = @transform_0, window_bounds = array<i64: 2, 4>}, {pipeline_mode = #tpu.pipeline_mode<synchronous>, transform_indices = @transform_1, window_bounds = array<i64: 2, 4>}, {pipeline_mode = #tpu.pipeline_mode<synchronous>, transform_indices = @transform_2, window_bounds = array<i64: 2, 4>}, {transform_indices = @transform_3, window_bounds = array<i64: 2, 8, 32>}, {transform_indices = @transform_4, window_bounds = array<i64: 2, 8, 32>}, {transform_indices = @transform_5, window_bounds = array<i64: 4>}]} {
    %c0_i32 = arith.constant 0 : i32
    %0 = arith.cmpi eq, %arg0, %c0_i32 : i32
    %1 = arith.extui %0 : i1 to i32
    %c0_i32_0 = arith.constant 0 : i32
    %2 = arith.cmpi ne, %1, %c0_i32_0 : i32
    scf.if %2 {
      %cst_18 = arith.constant 0.000000e+00 : f32
      %30 = vector.broadcast %cst_18 : f32 to vector<2x32xf32>
      %c0_19 = arith.constant 0 : index
      %c0_20 = arith.constant 0 : index
      %31 = vector.load %arg7[%c0_19, %c0_20] : memref<2x32xf32, #tpu.memory_space<vmem>>, vector<2x32xf32>
      tpu.vector_store %arg7[%c0_19, %c0_20], %30 {strides = array<i32>} : memref<2x32xf32, #tpu.memory_space<vmem>>, vector<2x32xf32>,
      %cst_21 = arith.constant 0.000000e+00 : f32
      %32 = vector.broadcast %cst_21 : f32 to vector<2x32xf32>
      %c0_22 = arith.constant 0 : index
      %c0_23 = arith.constant 0 : index
      %33 = vector.load %arg8[%c0_22, %c0_23] : memref<2x32xf32, #tpu.memory_space<vmem>>, vector<2x32xf32>
      tpu.vector_store %arg8[%c0_22, %c0_23], %32 {strides = array<i32>} : memref<2x32xf32, #tpu.memory_space<vmem>>, vector<2x32xf32>,
    } else {
    }
    %c0 = arith.constant 0 : index
    %c0_1 = arith.constant 0 : index
    %c0_2 = arith.constant 0 : index
    %3 = vector.load %arg4[%c0, %c0_1, %c0_2] : memref<2x8x32xf32, #tpu.memory_space<vmem>>, vector<2x8x32xf32>
    %c0_3 = arith.constant 0 : index
    %c0_4 = arith.constant 0 : index
    %c0_5 = arith.constant 0 : index
    %4 = vector.load %arg5[%c0_3, %c0_4, %c0_5] : memref<2x8x32xf32, #tpu.memory_space<vmem>>, vector<2x8x32xf32>
    %5 = tpu.iota {dimensions = array<i32: 1>} : vector<1x8x1xi32>
    %c8_i32 = arith.constant 8 : i32
    %6 = arith.muli %arg0, %c8_i32 : i32
    %7 = vector.broadcast %6 : i32 to vector<1x8x1xi32>
    %8 = arith.addi %5, %7 : vector<1x8x1xi32>
    %c20_i32 = arith.constant 20 : i32
    %9 = vector.broadcast %c20_i32 : i32 to vector<1x8x1xi32>
    %10 = arith.cmpi slt, %8, %9 : vector<1x8x1xi32>
    %cst = arith.constant 0.000000e+00 : f32
    %11 = vector.shape_cast %10 : vector<1x8x1xi1> to vector<1x8x1xi1>
    %12 = vector.broadcast %11 : vector<1x8x1xi1> to vector<2x8x32xi1>
    %13 = vector.broadcast %cst : f32 to vector<2x8x32xf32>
    %14 = arith.select %12, %3, %13 : vector<2x8x32xi1>, vector<2x8x32xf32>
    %cst_6 = arith.constant 0.000000e+00 : f32
    %15 = vector.shape_cast %10 : vector<1x8x1xi1> to vector<1x8x1xi1>
    %16 = vector.broadcast %15 : vector<1x8x1xi1> to vector<2x8x32xi1>
    %17 = vector.broadcast %cst_6 : f32 to vector<2x8x32xf32>
    %18 = arith.select %16, %4, %17 : vector<2x8x32xi1>, vector<2x8x32xf32>
    %c0_7 = arith.constant 0 : index
    %c0_8 = arith.constant 0 : index
    %19 = vector.load %arg7[%c0_7, %c0_8] : memref<2x32xf32, #tpu.memory_space<vmem>>, vector<2x32xf32>
    %cst_9 = arith.constant dense<0.000000e+00> : vector<2x32xf32>
    %20 = vector.multi_reduction <add>, %14, %cst_9 [1] : vector<2x8x32xf32> to vector<2x32xf32>
    %21 = arith.addf %19, %20 : vector<2x32xf32>
    %c0_10 = arith.constant 0 : index
    %c0_11 = arith.constant 0 : index
    %22 = vector.load %arg7[%c0_10, %c0_11] : memref<2x32xf32, #tpu.memory_space<vmem>>, vector<2x32xf32>
    tpu.vector_store %arg7[%c0_10, %c0_11], %21 {strides = array<i32>} : memref<2x32xf32, #tpu.memory_space<vmem>>, vector<2x32xf32>,
    %c0_12 = arith.constant 0 : index
    %c0_13 = arith.constant 0 : index
    %23 = vector.load %arg8[%c0_12, %c0_13] : memref<2x32xf32, #tpu.memory_space<vmem>>, vector<2x32xf32>
    %cst_14 = arith.constant dense<0.000000e+00> : vector<2x32xf32>
    %24 = vector.multi_reduction <add>, %18, %cst_14 [1] : vector<2x8x32xf32> to vector<2x32xf32>
    %25 = arith.addf %23, %24 : vector<2x32xf32>
    %c0_15 = arith.constant 0 : index
    %c0_16 = arith.constant 0 : index
    %26 = vector.load %arg8[%c0_15, %c0_16] : memref<2x32xf32, #tpu.memory_space<vmem>>, vector<2x32xf32>
    tpu.vector_store %arg8[%c0_15, %c0_16], %25 {strides = array<i32>} : memref<2x32xf32, #tpu.memory_space<vmem>>, vector<2x32xf32>,
    %c2_i32 = arith.constant 2 : i32
    %27 = arith.cmpi eq, %arg0, %c2_i32 : i32
    %28 = arith.extui %27 : i1 to i32
    %c0_i32_17 = arith.constant 0 : i32
    %29 = arith.cmpi ne, %28, %c0_i32_17 : i32
    scf.if %29 {
      %c0_18 = arith.constant 0 : index
      %c0_19 = arith.constant 0 : index
      %30 = vector.load %arg3[%c0_18, %c0_19] : memref<2x4xf32, #tpu.memory_space<vmem>>, vector<2x4xf32>
      %cst_20 = arith.constant dense<0.000000e+00> : vector<2xf32>
      %31 = vector.multi_reduction <add>, %30, %cst_20 [1] : vector<2x4xf32> to vector<2xf32>
      %32 = vector.shape_cast %31 : vector<2xf32> to vector<2x1xf32>
      %33 = vector.broadcast %32 : vector<2x1xf32> to vector<2x4xf32>
      %34 = arith.divf %30, %33 : vector<2x4xf32>
      %c0_21 = arith.constant 0 : index
      %c0_22 = arith.constant 0 : index
      %35 = vector.load %arg1[%c0_21, %c0_22] : memref<2x4xf32, #tpu.memory_space<vmem>>, vector<2x4xf32>
      %36 = math.log %35 : vector<2x4xf32>
      %cst_23 = arith.constant -1.000000e+02 : f32
      %37 = vector.broadcast %cst_23 : f32 to vector<2x4xf32>
      %38 = arith.maximumf %36, %37 : vector<2x4xf32>
      %cst_24 = arith.constant 1.000000e+00 : f32
      %39 = vector.broadcast %cst_24 : f32 to vector<2x4xf32>
      %40 = arith.subf %39, %35 : vector<2x4xf32>
      %41 = math.log %40 : vector<2x4xf32>
      %cst_25 = arith.constant -1.000000e+02 : f32
      %42 = vector.broadcast %cst_25 : f32 to vector<2x4xf32>
      %43 = arith.maximumf %41, %42 : vector<2x4xf32>
      %44 = arith.mulf %34, %38 : vector<2x4xf32>
      %cst_26 = arith.constant 1.000000e+00 : f32
      %45 = vector.broadcast %cst_26 : f32 to vector<2x4xf32>
      %46 = arith.subf %45, %34 : vector<2x4xf32>
      %47 = arith.mulf %46, %43 : vector<2x4xf32>
      %48 = arith.addf %44, %47 : vector<2x4xf32>
      %49 = vector.shape_cast %48 : vector<2x4xf32> to vector<1x2x4xf32>
      %cst_27 = arith.constant dense<0.000000e+00> : vector<1xf32>
      %50 = vector.multi_reduction <add>, %49, %cst_27 [1, 2] : vector<1x2x4xf32> to vector<1xf32>
      %51 = vector.shape_cast %50 : vector<1xf32> to vector<1x1x1xf32>
      %52 = vector.extract %51[0, 0, 0] : f32 from vector<1x1x1xf32>
      %cst_28 = arith.constant 8.000000e+00 : f32
      %53 = arith.divf %52, %cst_28 : f32
      %cst_29 = arith.constant 0.000000e+00 : f32
      %54 = arith.subf %cst_29, %53 : f32
      %c0_30 = arith.constant 0 : index
      %c0_31 = arith.constant 0 : index
      %55 = vector.load %arg2[%c0_30, %c0_31] : memref<2x4xf32, #tpu.memory_space<vmem>>, vector<2x4xf32>
      %56 = math.log %55 : vector<2x4xf32>
      %cst_32 = arith.constant -1.000000e+02 : f32
      %57 = vector.broadcast %cst_32 : f32 to vector<2x4xf32>
      %58 = arith.maximumf %56, %57 : vector<2x4xf32>
      %cst_33 = arith.constant 1.000000e+00 : f32
      %59 = vector.broadcast %cst_33 : f32 to vector<2x4xf32>
      %60 = arith.subf %59, %55 : vector<2x4xf32>
      %61 = math.log %60 : vector<2x4xf32>
      %cst_34 = arith.constant -1.000000e+02 : f32
      %62 = vector.broadcast %cst_34 : f32 to vector<2x4xf32>
      %63 = arith.maximumf %61, %62 : vector<2x4xf32>
      %cst_35 = arith.constant 2.500000e-01 : f32
      %64 = vector.broadcast %cst_35 : f32 to vector<2x4xf32>
      %65 = arith.mulf %64, %58 : vector<2x4xf32>
      %cst_36 = arith.constant 1.000000e+00 : f32
      %cst_37 = arith.constant 2.500000e-01 : f32
      %66 = arith.subf %cst_36, %cst_37 : f32
      %67 = vector.broadcast %66 : f32 to vector<2x4xf32>
      %68 = arith.mulf %67, %63 : vector<2x4xf32>
      %69 = arith.addf %65, %68 : vector<2x4xf32>
      %70 = vector.shape_cast %69 : vector<2x4xf32> to vector<1x2x4xf32>
      %cst_38 = arith.constant dense<0.000000e+00> : vector<1xf32>
      %71 = vector.multi_reduction <add>, %70, %cst_38 [1, 2] : vector<1x2x4xf32> to vector<1xf32>
      %72 = vector.shape_cast %71 : vector<1xf32> to vector<1x1x1xf32>
      %73 = vector.extract %72[0, 0, 0] : f32 from vector<1x1x1xf32>
      %cst_39 = arith.constant 8.000000e+00 : f32
      %74 = arith.divf %73, %cst_39 : f32
      %cst_40 = arith.constant 0.000000e+00 : f32
      %75 = arith.subf %cst_40, %74 : f32
      %c0_41 = arith.constant 0 : index
      %c0_42 = arith.constant 0 : index
      %76 = vector.load %arg7[%c0_41, %c0_42] : memref<2x32xf32, #tpu.memory_space<vmem>>, vector<2x32xf32>
      %cst_43 = arith.constant 5.000000e-02 : f32
      %77 = vector.broadcast %cst_43 : f32 to vector<2x32xf32>
      %78 = arith.mulf %76, %77 : vector<2x32xf32>
      %c0_44 = arith.constant 0 : index
      %c0_45 = arith.constant 0 : index
      %79 = vector.load %arg8[%c0_44, %c0_45] : memref<2x32xf32, #tpu.memory_space<vmem>>, vector<2x32xf32>
      %cst_46 = arith.constant 5.000000e-02 : f32
      %80 = vector.broadcast %cst_46 : f32 to vector<2x32xf32>
      %81 = arith.mulf %79, %80 : vector<2x32xf32>
      %82 = arith.mulf %78, %78 : vector<2x32xf32>
      %cst_47 = arith.constant dense<0.000000e+00> : vector<2xf32>
      %83 = vector.multi_reduction <add>, %82, %cst_47 [1] : vector<2x32xf32> to vector<2xf32>
      %84 = vector.shape_cast %83 : vector<2xf32> to vector<2x1xf32>
      %85 = math.sqrt %84 : vector<2x1xf32>
      %86 = arith.mulf %81, %81 : vector<2x32xf32>
      %cst_48 = arith.constant dense<0.000000e+00> : vector<2xf32>
      %87 = vector.multi_reduction <add>, %86, %cst_48 [1] : vector<2x32xf32> to vector<2xf32>
      %88 = vector.shape_cast %87 : vector<2xf32> to vector<2x1xf32>
      %89 = math.sqrt %88 : vector<2x1xf32>
      %cst_49 = arith.constant 1.000000e+02 : f32
      %90 = vector.broadcast %cst_49 : f32 to vector<2x1xf32>
      %91 = arith.subf %90, %85 : vector<2x1xf32>
      %cst_50 = arith.constant 0.000000e+00 : f32
      %92 = vector.broadcast %cst_50 : f32 to vector<2x1xf32>
      %93 = arith.maximumf %91, %92 : vector<2x1xf32>
      %94 = arith.addf %93, %89 : vector<2x1xf32>
      %95 = arith.mulf %94, %94 : vector<2x1xf32>
      %96 = vector.shape_cast %95 : vector<2x1xf32> to vector<1x2x1xf32>
      %cst_51 = arith.constant dense<0.000000e+00> : vector<1xf32>
      %97 = vector.multi_reduction <add>, %96, %cst_51 [1, 2] : vector<1x2x1xf32> to vector<1xf32>
      %98 = vector.shape_cast %97 : vector<1xf32> to vector<1x1x1xf32>
      %99 = vector.extract %98[0, 0, 0] : f32 from vector<1x1x1xf32>
      %cst_52 = arith.constant 5.000000e-01 : f32
      %100 = arith.mulf %99, %cst_52 : f32
      %cst_53 = arith.constant 5.000000e-04 : f32
      %101 = arith.mulf %cst_53, %100 : f32
      %102 = arith.addf %54, %101 : f32
      %cst_54 = arith.constant 2.000000e-01 : f32
      %103 = arith.mulf %cst_54, %75 : f32
      %104 = arith.addf %102, %103 : f32
      %c0_55 = arith.constant 0 : index
      %105 = memref.load %arg6[%c0_55] : memref<4xf32, #tpu.memory_space<smem>>
      memref.store %54, %arg6[%c0_55] : memref<4xf32, #tpu.memory_space<smem>>
      %c1 = arith.constant 1 : index
      %106 = memref.load %arg6[%c1] : memref<4xf32, #tpu.memory_space<smem>>
      memref.store %75, %arg6[%c1] : memref<4xf32, #tpu.memory_space<smem>>
      %c2 = arith.constant 2 : index
      %107 = memref.load %arg6[%c2] : memref<4xf32, #tpu.memory_space<smem>>
      memref.store %100, %arg6[%c2] : memref<4xf32, #tpu.memory_space<smem>>
      %c3 = arith.constant 3 : index
      %108 = memref.load %arg6[%c3] : memref<4xf32, #tpu.memory_space<smem>>
      memref.store %104, %arg6[%c3] : memref<4xf32, #tpu.memory_space<smem>>
    } else {
    }
    return
  }
  func.func @transform_0(%arg0: i32) -> (i32, i32) {
    %c0_i32 = arith.constant 0 : i32
    %c0_i32_0 = arith.constant 0 : i32
    %c0_i32_1 = arith.constant 0 : i32
    return %c0_i32, %c0_i32_0 : i32, i32
  }
  func.func @transform_1(%arg0: i32) -> (i32, i32) {
    %c0_i32 = arith.constant 0 : i32
    %c0_i32_0 = arith.constant 0 : i32
    %c0_i32_1 = arith.constant 0 : i32
    return %c0_i32, %c0_i32_0 : i32, i32
  }
  func.func @transform_2(%arg0: i32) -> (i32, i32) {
    %c0_i32 = arith.constant 0 : i32
    %c0_i32_0 = arith.constant 0 : i32
    %c0_i32_1 = arith.constant 0 : i32
    return %c0_i32, %c0_i32_0 : i32, i32
  }
  func.func @transform_3(%arg0: i32) -> (i32, i32, i32) {
    %c0_i32 = arith.constant 0 : i32
    %c0_i32_0 = arith.constant 0 : i32
    %c0_i32_1 = arith.constant 0 : i32
    return %c0_i32, %arg0, %c0_i32_0 : i32, i32, i32
  }
  func.func @transform_4(%arg0: i32) -> (i32, i32, i32) {
    %c0_i32 = arith.constant 0 : i32
    %c0_i32_0 = arith.constant 0 : i32
    %c0_i32_1 = arith.constant 0 : i32
    return %c0_i32, %arg0, %c0_i32_0 : i32, i32, i32
  }
  func.func @transform_5(%arg0: i32) -> i32 {
    %c0_i32 = arith.constant 0 : i32
    %c0_i32_0 = arith.constant 0 : i32
    return %c0_i32 : i32
  }
}

</mosaic_0001>

<llo_original>
// kernel: tpu_custom_call.1
$region0: #{tpu_custom_call.1}
  #allocation0 [shape = 'u32[]', space=smem, size = 0x4, offset = 0x4, fixed_abs, tag = 'smem constant byte address 0x4 - core index']
  #allocation1 [shape = 'u32[72,128]{1,0:T(1,128)}', space=vmem, size = 0x9000, scoped, tag = 'internal scratch']
  #allocation2 [shape = 'f32[2,32]{1,0:T(2,128)}', space=vmem, size = 0x400, scoped, tag = 'scratch operand']
  #allocation3 [shape = 'f32[2,32]{1,0:T(2,128)}', space=vmem, size = 0x400, scoped, tag = 'scratch operand']
  %s0 = inlined_call_operand.vmem [shape: f32[2,4], index: 0, kind: input, shape index: {}]
  %s1 = inlined_call_operand.vmem [shape: f32[2,4], index: 1, kind: input, shape index: {}]
  %s2 = inlined_call_operand.vmem [shape: f32[2,4], index: 2, kind: input, shape index: {}]
  %s3 = inlined_call_operand.vmem [shape: f32[2,20,32], index: 3, kind: input, shape index: {}]
  %s4 = inlined_call_operand.vmem [shape: f32[2,20,32], index: 4, kind: input, shape index: {}]
  %s5 = inlined_call_operand.hbm [shape: f32[4], index: 5, kind: output, shape index: {}]
  %s6 = sld [smem:[#allocation0]]
  $region137: #{tpu_custom_call.1} parent=0
    _
  %s8 = ssub.s32 1, %s6
  %s9 = scalar_select 0, %s8, %s6
  $region1: #{tpu_custom_call.1} parent=0
    #allocation4 [shape = 'u8[16384]{0}', space=vmem, size = 0x4000, scoped, tag = 'input window, operand 3']
    #allocation5 [shape = 'u8[16384]{0}', space=vmem, size = 0x4000, scoped, tag = 'input window, operand 4']
    #allocation6 [shape = 'u8[512]{0}', space=smem, size = 0x200, scoped, tag = 'output window, operand 0, single buffered']
    #allocation7 [shape = 's32[2]{0}', space=sflag, size = 0x8, scoped, tag = 'scoped memory for tpu_custom_call.1']
    %10 = vsyncpa [#allocation7], 0
    loop: start=0, step=1, limit=5
    $region2: #{tpu_custom_call.1} parent=1 // loop_pre_header
      _
    $region3: #{tpu_custom_call.1} parent=1 // loop_header
      %s12 = sphi 0, %s16
      %p13 = scmp.ge.s32.totalorder %s12, 5
      %s20 = sphi 0, %s20
      %s22 = sphi 0, %s20
      %s23 = sphi 0, %s22
      %s37 = sphi 0, %s23
      %s41 = sphi 0, %s41
      %s43 = sphi 0, %s41
      %s44 = sphi 0, %s43
      %s58 = sphi 0, %s44
      %s62 = sphi 0, %s62
      %s64 = sphi 0, %s62
      %s65 = sphi 0, %s64
      %s79 = sphi 0, %s65
      %s85 = sphi 0, %s87
      %s88 = sphi 0, %s85
      %s89 = sphi 0, %s88
      %s105 = sphi 0, %s89
      %s111 = sphi 0, %s113
      %s114 = sphi 0, %s111
      %s115 = sphi 0, %s114
      %s131 = sphi 0, %s115
      %s135 = sphi 0, %s135
      %s137 = sphi 0, %s135
      %s138 = sphi 0, %s137
      %s152 = sphi 0, %s138
    $region4: #{tpu_custom_call.1} parent=1 // loop_header_branch
      %15 = sbr.rel (%p13) target = $region8
    $region5: #{tpu_custom_call.1} parent=1 // loop_body
      %s17 = ssub.s32 %s12, 1
      %s18 = ssub.s32 %s12, 2
      %s19 = sadd.s32 %s12, 1
      %s21 = sadd.s32 %s20, 1
      %p24 = scmp.eq.s32.totalorder %s12, 2
      %p25 = scmp.ne.s32.totalorder %s20, %s22
      %p26 = scmp.eq.s32.totalorder %s12, 0
      %p27 = por %p25, %p26
      %p28 = scmp.ne.s32.totalorder %s20, %s22
      %p29 = scmp.eq.s32.totalorder %s17, 2
      %p30 = por %p28, %p29
      %p31 = scmp.ne.s32.totalorder %s22, %s23
      %p32 = scmp.eq.s32.totalorder %s17, 0
      %p33 = por %p31, %p32
      %p34 = scmp.ne.s32.totalorder %s22, %s23
      %p35 = scmp.eq.s32.totalorder %s18, 2
      %p36 = por %p34, %p35
      %p38 = scmp.ne.s32.totalorder %s23, %s37
      %p39 = scmp.eq.s32.totalorder %s18, 0
      %p40 = por %p38, %p39
      %s42 = sadd.s32 %s41, 1
      %p45 = scmp.eq.s32.totalorder %s12, 2
      %p46 = scmp.ne.s32.totalorder %s41, %s43
      %p47 = scmp.eq.s32.totalorder %s12, 0
      %p48 = por %p46, %p47
      %p49 = scmp.ne.s32.totalorder %s41, %s43
      %p50 = scmp.eq.s32.totalorder %s17, 2
      %p51 = por %p49, %p50
      %p52 = scmp.ne.s32.totalorder %s43, %s44
      %p53 = scmp.eq.s32.totalorder %s17, 0
      %p54 = por %p52, %p53
      %p55 = scmp.ne.s32.totalorder %s43, %s44
      %p56 = scmp.eq.s32.totalorder %s18, 2
      %p57 = por %p55, %p56
      %p59 = scmp.ne.s32.totalorder %s44, %s58
      %p60 = scmp.eq.s32.totalorder %s18, 0
      %p61 = por %p59, %p60
      %s63 = sadd.s32 %s62, 1
      %p66 = scmp.eq.s32.totalorder %s12, 2
      %p67 = scmp.ne.s32.totalorder %s62, %s64
      %p68 = scmp.eq.s32.totalorder %s12, 0
      %p69 = por %p67, %p68
      %p70 = scmp.ne.s32.totalorder %s62, %s64
      %p71 = scmp.eq.s32.totalorder %s17, 2
      %p72 = por %p70, %p71
      %p73 = scmp.ne.s32.totalorder %s64, %s65
      %p74 = scmp.eq.s32.totalorder %s17, 0
      %p75 = por %p73, %p74
      %p76 = scmp.ne.s32.totalorder %s64, %s65
      %p77 = scmp.eq.s32.totalorder %s18, 2
      %p78 = por %p76, %p77
      %p80 = scmp.ne.s32.totalorder %s65, %s79
      %p81 = scmp.eq.s32.totalorder %s18, 0
      %p82 = por %p80, %p81
      %s83 = ssub.s32 %s12, %s19
      %p84 = scmp.eq.s32.totalorder %s83, 0
      %s86 = sadd.s32 %s85, 1
      %s87 = scalar_select %p84, %s85, %s86
      %p90 = pneg %p84
      %p91 = scmp.eq.s32.totalorder %s12, 2
      %p92 = por %p90, %p91
      %p93 = scmp.ne.s32.totalorder %s85, %s88
      %p94 = scmp.eq.s32.totalorder %s12, 0
      %p95 = por %p93, %p94
      %p96 = scmp.ne.s32.totalorder %s85, %s88
      %p97 = scmp.eq.s32.totalorder %s17, 2
      %p98 = por %p96, %p97
      %p99 = scmp.ne.s32.totalorder %s88, %s89
      %p100 = scmp.eq.s32.totalorder %s17, 0
      %p101 = por %p99, %p100
      %p102 = scmp.ne.s32.totalorder %s88, %s89
      %p103 = scmp.eq.s32.totalorder %s18, 2
      %p104 = por %p102, %p103
      %p106 = scmp.ne.s32.totalorder %s89, %s105
      %p107 = scmp.eq.s32.totalorder %s18, 0
      %p108 = por %p106, %p107
      %s109 = ssub.s32 %s12, %s19
      %p110 = scmp.eq.s32.totalorder %s109, 0
      %s112 = sadd.s32 %s111, 1
      %s113 = scalar_select %p110, %s111, %s112
      %p116 = pneg %p110
      %p117 = scmp.eq.s32.totalorder %s12, 2
      %p118 = por %p116, %p117
      %p119 = scmp.ne.s32.totalorder %s111, %s114
      %p120 = scmp.eq.s32.totalorder %s12, 0
      %p121 = por %p119, %p120
      %p122 = scmp.ne.s32.totalorder %s111, %s114
      %p123 = scmp.eq.s32.totalorder %s17, 2
      %p124 = por %p122, %p123
      %p125 = scmp.ne.s32.totalorder %s114, %s115
      %p126 = scmp.eq.s32.totalorder %s17, 0
      %p127 = por %p125, %p126
      %p128 = scmp.ne.s32.totalorder %s114, %s115
      %p129 = scmp.eq.s32.totalorder %s18, 2
      %p130 = por %p128, %p129
      %p132 = scmp.ne.s32.totalorder %s115, %s131
      %p133 = scmp.eq.s32.totalorder %s18, 0
      %p134 = por %p132, %p133
      %s136 = sadd.s32 %s135, 1
      %p139 = scmp.eq.s32.totalorder %s12, 2
      %p140 = scmp.ne.s32.totalorder %s135, %s137
      %p141 = scmp.eq.s32.totalorder %s12, 0
      %p142 = por %p140, %p141
      %p143 = scmp.ne.s32.totalorder %s135, %s137
      %p144 = scmp.eq.s32.totalorder %s17, 2
      %p145 = por %p143, %p144
      %p146 = scmp.ne.s32.totalorder %s137, %s138
      %p147 = scmp.eq.s32.totalorder %s17, 0
      %p148 = por %p146, %p147
      %p149 = scmp.ne.s32.totalorder %s137, %s138
      %p150 = scmp.eq.s32.totalorder %s18, 2
      %p151 = por %p149, %p150
      %p153 = scmp.ne.s32.totalorder %s138, %s152
      %p154 = scmp.eq.s32.totalorder %s18, 0
      %p155 = por %p153, %p154
      %p156 = scmp.le.s32.totalorder 1, %s12
      %p157 = scmp.lt.s32.totalorder %s12, 4
      %p158 = pnand %p156, %p157
      %p159 = pneg %p158
      // Predicated region
      $region9: #{tpu_custom_call.1} parent=5 // pred_check
        _
      $region10: #{tpu_custom_call.1} parent=5 // pred_check_branch
        %161 = sbr.rel (%p158) target = $region12
      $region11: #{tpu_custom_call.1} parent=5 // pred_region
        %s162 = ssub.s32 %s12, 1
        // Predicated region
        $region13: #{tpu_custom_call.1} parent=11 // pred_check
          %p163 = pneg %p33
        $region14: #{tpu_custom_call.1} parent=11 // pred_check_branch
          %165 = sbr.rel (%p163) target = $region16
        $region15: #{tpu_custom_call.1} parent=11 // pred_region
          _
        $region16: #{tpu_custom_call.1} parent=11 // pred_fallthru
          _
        // Predicated region
        $region17: #{tpu_custom_call.1} parent=11 // pred_check
          %p166 = pneg %p54
        $region18: #{tpu_custom_call.1} parent=11 // pred_check_branch
          %168 = sbr.rel (%p166) target = $region20
        $region19: #{tpu_custom_call.1} parent=11 // pred_region
          _
        $region20: #{tpu_custom_call.1} parent=11 // pred_fallthru
          _
        // Predicated region
        $region21: #{tpu_custom_call.1} parent=11 // pred_check
          %p169 = pneg %p75
        $region22: #{tpu_custom_call.1} parent=11 // pred_check_branch
          %171 = sbr.rel (%p169) target = $region24
        $region23: #{tpu_custom_call.1} parent=11 // pred_region
          _
        $region24: #{tpu_custom_call.1} parent=11 // pred_fallthru
          _
      $region12: #{tpu_custom_call.1} parent=5 // pred_fallthru
        _
      %p172 = scmp.lt.s32.totalorder %s12, 3
      // Predicated region
      $region25: #{tpu_custom_call.1} parent=5 // pred_check
        %p173 = pneg %p172
      $region26: #{tpu_custom_call.1} parent=5 // pred_check_branch
        %175 = sbr.rel (%p173) target = $region28
      $region27: #{tpu_custom_call.1} parent=5 // pred_region
        // Predicated region
        $region29: #{tpu_custom_call.1} parent=27 // pred_check
          %p176 = pneg %p95
        $region30: #{tpu_custom_call.1} parent=27 // pred_check_branch
          %178 = sbr.rel (%p176) target = $region32
        $region31: #{tpu_custom_call.1} parent=27 // pred_region
          %s179 = sand.u32 %s85, 1
          %s180 = sand.u32 %s85, 1
          %s181 = smul.addr %s180, 16
          %s182 = scalar_lea.vmem [#allocation4], %s181
          %s183 = smul.addr %s12, 8
          %s184 = scalar_lea.vmem %s3, %s183
          // Predicated region
          $region33: #{tpu_custom_call.1} parent=31 // pred_check
            _
          $region34: #{tpu_custom_call.1} parent=31 // pred_check_branch
            %186 = sbr.rel (0) target = $region36
          $region35: #{tpu_custom_call.1} parent=31 // pred_region
            // Predicated region
            $region37: #{tpu_custom_call.1} parent=35 // pred_check
              _
            $region38: #{tpu_custom_call.1} parent=35 // pred_check_branch
              %188 = sbr.rel (0) target = $region40
            $region39: #{tpu_custom_call.1} parent=35 // pred_region
              // Predicated region
              $region52: #{tpu_custom_call.1} parent=39 // pred_check
                _
              $region53: #{tpu_custom_call.1} parent=39 // pred_check_branch
                %206 = sbr.rel (0) target = $region55
              $region54: #{tpu_custom_call.1} parent=39 // pred_region
                loop: start=0, step=1, limit=1
                $region56: #{tpu_custom_call.1} parent=54 // loop_pre_header
                  _
                $region57: #{tpu_custom_call.1} parent=54 // loop_header
                  %s208 = sphi 0, %s212
                  %p209 = scmp.ge.s32.totalorder %s208, 1
                  %s213 = sphi %s184, %s184
                  %s214 = sphi %s182, %s182
                $region58: #{tpu_custom_call.1} parent=54 // loop_header_branch
                  %211 = sbr.rel (%p209) target = $region62
                $region59: #{tpu_custom_call.1} parent=54 // loop_body
                  %v215 = vld [vmem:[%s213] sm:$0xff]
                  %216 = vst [vmem:[%s214] sm:$0xff] %v215
                  %v217 = vld [vmem:[%s213 + $0x18] sm:$0xff]
                  %218 = vst [vmem:[%s214 + $0x8] sm:$0xff] %v217
                $region60: #{tpu_custom_call.1} parent=54 // loop_footer
                  %s212 = sadd.s32 1, %s208
                $region61: #{tpu_custom_call.1} parent=54 // loop_footer_branch
                  %207 = sbr.rel target = $region57
                $region62: #{tpu_custom_call.1} parent=54 // loop_exit
                  _
              $region55: #{tpu_custom_call.1} parent=39 // pred_fallthru
                _
              // Predicated region
              $region63: #{tpu_custom_call.1} parent=39 // pred_check
                _
              $region64: #{tpu_custom_call.1} parent=39 // pred_check_branch
                %220 = sbr.rel target = $region66
              $region65: #{tpu_custom_call.1} parent=39 // pred_region
                _
              $region66: #{tpu_custom_call.1} parent=39 // pred_fallthru
                _
            $region40: #{tpu_custom_call.1} parent=35 // pred_fallthru
              _
            // Predicated region
            $region41: #{tpu_custom_call.1} parent=35 // pred_check
              _
            $region42: #{tpu_custom_call.1} parent=35 // pred_check_branch
              %190 = sbr.rel target = $region44
            $region43: #{tpu_custom_call.1} parent=35 // pred_region
              %s192 = ssub.s32 256, 1
              loop: start=0, step=1, limit=1
              $region45: #{tpu_custom_call.1} parent=43 // loop_pre_header
                _
              $region46: #{tpu_custom_call.1} parent=43 // loop_header
                %s194 = sphi 0, %s198
                %p195 = scmp.ge.s32.totalorder %s194, 1
                %s199 = sphi %s184, %s184
                %s200 = sphi %s182, %s182
              $region47: #{tpu_custom_call.1} parent=43 // loop_header_branch
                %197 = sbr.rel (%p195) target = $region51
              $region48: #{tpu_custom_call.1} parent=43 // loop_body
                %v201 = vld [vmem:[%s199] sm:%s192]
                %202 = vst [vmem:[%s200] sm:%s192] %v201
                %v203 = vld [vmem:[%s199 + $0x18] sm:%s192]
                %204 = vst [vmem:[%s200 + $0x8] sm:%s192] %v203
              $region49: #{tpu_custom_call.1} parent=43 // loop_footer
                %s198 = sadd.s32 1, %s194
              $region50: #{tpu_custom_call.1} parent=43 // loop_footer_branch
                %193 = sbr.rel target = $region46
              $region51: #{tpu_custom_call.1} parent=43 // loop_exit
                _
            $region44: #{tpu_custom_call.1} parent=35 // pred_fallthru
              _
          $region36: #{tpu_custom_call.1} parent=31 // pred_fallthru
            _
          %221 = vnop
        $region32: #{tpu_custom_call.1} parent=27 // pred_fallthru
          _
        // Predicated region
        $region67: #{tpu_custom_call.1} parent=27 // pred_check
          %p222 = pneg %p121
        $region68: #{tpu_custom_call.1} parent=27 // pred_check_branch
          %224 = sbr.rel (%p222) target = $region70
        $region69: #{tpu_custom_call.1} parent=27 // pred_region
          %s225 = sand.u32 %s111, 1
          %s226 = sand.u32 %s111, 1
          %s227 = smul.addr %s226, 16
          %s228 = scalar_lea.vmem [#allocation5], %s227
          %s229 = smul.addr %s12, 8
          %s230 = scalar_lea.vmem %s4, %s229
          // Predicated region
          $region71: #{tpu_custom_call.1} parent=69 // pred_check
            _
          $region72: #{tpu_custom_call.1} parent=69 // pred_check_branch
            %232 = sbr.rel (0) target = $region74
          $region73: #{tpu_custom_call.1} parent=69 // pred_region
            // Predicated region
            $region75: #{tpu_custom_call.1} parent=73 // pred_check
              _
            $region76: #{tpu_custom_call.1} parent=73 // pred_check_branch
              %234 = sbr.rel (0) target = $region78
            $region77: #{tpu_custom_call.1} parent=73 // pred_region
              // Predicated region
              $region90: #{tpu_custom_call.1} parent=77 // pred_check
                _
              $region91: #{tpu_custom_call.1} parent=77 // pred_check_branch
                %252 = sbr.rel (0) target = $region93
              $region92: #{tpu_custom_call.1} parent=77 // pred_region
                loop: start=0, step=1, limit=1
                $region94: #{tpu_custom_call.1} parent=92 // loop_pre_header
                  _
                $region95: #{tpu_custom_call.1} parent=92 // loop_header
                  %s254 = sphi 0, %s258
                  %p255 = scmp.ge.s32.totalorder %s254, 1
                  %s259 = sphi %s230, %s230
                  %s260 = sphi %s228, %s228
                $region96: #{tpu_custom_call.1} parent=92 // loop_header_branch
                  %257 = sbr.rel (%p255) target = $region100
                $region97: #{tpu_custom_call.1} parent=92 // loop_body
                  %v261 = vld [vmem:[%s259] sm:$0xff]
                  %262 = vst [vmem:[%s260] sm:$0xff] %v261
                  %v263 = vld [vmem:[%s259 + $0x18] sm:$0xff]
                  %264 = vst [vmem:[%s260 + $0x8] sm:$0xff] %v263
                $region98: #{tpu_custom_call.1} parent=92 // loop_footer
                  %s258 = sadd.s32 1, %s254
                $region99: #{tpu_custom_call.1} parent=92 // loop_footer_branch
                  %253 = sbr.rel target = $region95
                $region100: #{tpu_custom_call.1} parent=92 // loop_exit
                  _
              $region93: #{tpu_custom_call.1} parent=77 // pred_fallthru
                _
              // Predicated region
              $region101: #{tpu_custom_call.1} parent=77 // pred_check
                _
              $region102: #{tpu_custom_call.1} parent=77 // pred_check_branch
                %266 = sbr.rel target = $region104
              $region103: #{tpu_custom_call.1} parent=77 // pred_region
                _
              $region104: #{tpu_custom_call.1} parent=77 // pred_fallthru
                _
            $region78: #{tpu_custom_call.1} parent=73 // pred_fallthru
              _
            // Predicated region
            $region79: #{tpu_custom_call.1} parent=73 // pred_check
              _
            $region80: #{tpu_custom_call.1} parent=73 // pred_check_branch
              %236 = sbr.rel target = $region82
            $region81: #{tpu_custom_call.1} parent=73 // pred_region
              %s238 = ssub.s32 256, 1
              loop: start=0, step=1, limit=1
              $region83: #{tpu_custom_call.1} parent=81 // loop_pre_header
                _
              $region84: #{tpu_custom_call.1} parent=81 // loop_header
                %s240 = sphi 0, %s244
                %p241 = scmp.ge.s32.totalorder %s240, 1
                %s245 = sphi %s230, %s230
                %s246 = sphi %s228, %s228
              $region85: #{tpu_custom_call.1} parent=81 // loop_header_branch
                %243 = sbr.rel (%p241) target = $region89
              $region86: #{tpu_custom_call.1} parent=81 // loop_body
                %v247 = vld [vmem:[%s245] sm:%s238]
                %248 = vst [vmem:[%s246] sm:%s238] %v247
                %v249 = vld [vmem:[%s245 + $0x18] sm:%s238]
                %250 = vst [vmem:[%s246 + $0x8] sm:%s238] %v249
              $region87: #{tpu_custom_call.1} parent=81 // loop_footer
                %s244 = sadd.s32 1, %s240
              $region88: #{tpu_custom_call.1} parent=81 // loop_footer_branch
                %239 = sbr.rel target = $region84
              $region89: #{tpu_custom_call.1} parent=81 // loop_exit
                _
            $region82: #{tpu_custom_call.1} parent=73 // pred_fallthru
              _
          $region74: #{tpu_custom_call.1} parent=69 // pred_fallthru
            _
          %267 = vnop
        $region70: #{tpu_custom_call.1} parent=27 // pred_fallthru
          _
      $region28: #{tpu_custom_call.1} parent=5 // pred_fallthru
        _
      %p268 = scmp.le.s32.totalorder 1, %s12
      %p269 = scmp.lt.s32.totalorder %s12, 4
      %p270 = pnand %p268, %p269
      %p271 = pneg %p270
      // Predicated region
      $region105: #{tpu_custom_call.1} parent=5 // pred_check
        _
      $region106: #{tpu_custom_call.1} parent=5 // pred_check_branch
        %273 = sbr.rel (%p270) target = $region108
      $region107: #{tpu_custom_call.1} parent=5 // pred_region
        %s274 = ssub.s32 %s12, 1
        %s275 = sand.u32 %s88, 1
        %s276 = sand.u32 %s88, 1
        %s277 = smul.addr %s276, 16
        %s278 = scalar_lea.vmem [#allocation4], %s277
        // Predicated region
        $region109: #{tpu_custom_call.1} parent=107 // pred_check
          %p279 = pneg %p101
        $region110: #{tpu_custom_call.1} parent=107 // pred_check_branch
          %281 = sbr.rel (%p279) target = $region112
        $region111: #{tpu_custom_call.1} parent=107 // pred_region
          _
        $region112: #{tpu_custom_call.1} parent=107 // pred_fallthru
          _
        %s282 = sand.u32 %s114, 1
        %s283 = sand.u32 %s114, 1
        %s284 = smul.addr %s283, 16
        %s285 = scalar_lea.vmem [#allocation5], %s284
        // Predicated region
        $region113: #{tpu_custom_call.1} parent=107 // pred_check
          %p286 = pneg %p127
        $region114: #{tpu_custom_call.1} parent=107 // pred_check_branch
          %288 = sbr.rel (%p286) target = $region116
        $region115: #{tpu_custom_call.1} parent=107 // pred_region
          _
        $region116: #{tpu_custom_call.1} parent=107 // pred_fallthru
          _
        %p289 = pneg %p33
        %p290 = pneg %p30
        %p291 = pneg %p54
        %p292 = pneg %p51
        %p293 = pneg %p75
        %p294 = pneg %p72
        %s295 = sand.u32 %s88, 1
        %s296 = sand.u32 %s88, 1
        %s297 = smul.addr %s296, 16
        %s298 = scalar_lea.vmem [#allocation4], %s297
        %p299 = pneg %p101
        %p300 = pneg %p98
        %s301 = sand.u32 %s114, 1
        %s302 = sand.u32 %s114, 1
        %s303 = smul.addr %s302, 16
        %s304 = scalar_lea.vmem [#allocation5], %s303
        %p305 = pneg %p127
        %p306 = pneg %p124
        %p307 = pneg %p148
        %p308 = pneg %p145
        %p309 = scmp.eq.s32.totalorder %s17, 0
        // Predicated region
        $region117: #{tpu_custom_call.1} parent=107 // pred_check
          %p310 = pneg %p309
        $region118: #{tpu_custom_call.1} parent=107 // pred_check_branch
          %312 = sbr.rel (%p310) target = $region120
        $region119: #{tpu_custom_call.1} parent=107 // pred_region
          %vm313 = vcmask 254976
          %314 = vst.msk [vmem:[#allocation2] sm:$0x3] %vm313, 0.0
          %315 = vst.msk [vmem:[#allocation3] sm:$0x3] %vm313, 0.0
        $region120: #{tpu_custom_call.1} parent=107 // pred_fallthru
          _
        %v316 = vld [vmem:[%s278] sm:$0xff]
        %v317 = vld [vmem:[%s278 + $0x8] sm:$0xff]
        %v318 = vld [vmem:[%s285] sm:$0xff]
        %v319 = vld [vmem:[%s285 + $0x8] sm:$0xff]
        %v320 = vlaneseq
        %v321 = vshrl.u32 %v320, 7
        %s322 = smul.u32 %s17, 8
        %v323 = vstv %s322
        %v324 = vadd.s32 %v321, %v323
        %vm325 = vcmp.lt.s32.totalorder %v324, 20
        %v326 = vsel %vm325, 1, 0
        %vm327 = vcmp.eq.s32.totalorder %v326, 1
        %v328 = vsel %vm327, %v316, 0.0
        %v329 = vsel %vm327, %v317, 0.0
        %v330 = vsel %vm327, %v318, 0.0
        %v331 = vsel %vm327, %v319, 0.0
        %v332 = vld [vmem:[#allocation2] sm:$0x3]
        %vm333 = vcmask 261120
        %v334 = vsel %vm333, %v328, 0.0
        %v335 = vrot.slane %v334, 4
        %v336 = vadd.f32 %v334, %v335
        %v337 = vrot.slane %v336, 2
        %v338 = vadd.f32 %v336, %v337
        %v339 = vrot.slane %v338, 1
        %v340 = vadd.f32 %v338, %v339
        %v341 = vsel %vm333, %v329, 0.0
        %v342 = vrot.slane %v341, 4
        %v343 = vadd.f32 %v341, %v342
        %v344 = vrot.slane %v343, 2
        %v345 = vadd.f32 %v343, %v344
        %v346 = vrot.slane %v345, 1
        %v347 = vadd.f32 %v345, %v346
        %vm350 = vcmask 1041409
        %v351 = vsel %vm350, %v347, %v340
        %v353 = vadd.f32 %v332, %v351
        %vm354 = vcmask 254976
        %355 = vst.msk [vmem:[#allocation2] sm:$0x3] %vm354, %v353
        %v356 = vld [vmem:[#allocation3] sm:$0x3]
        %v357 = vsel %vm333, %v330, 0.0
        %v358 = vrot.slane %v357, 4
        %v359 = vadd.f32 %v357, %v358
        %v360 = vrot.slane %v359, 2
        %v361 = vadd.f32 %v359, %v360
        %v362 = vrot.slane %v361, 1
        %v363 = vadd.f32 %v361, %v362
        %v364 = vsel %vm333, %v331, 0.0
        %v365 = vrot.slane %v364, 4
        %v366 = vadd.f32 %v364, %v365
        %v367 = vrot.slane %v366, 2
        %v368 = vadd.f32 %v366, %v367
        %v369 = vrot.slane %v368, 1
        %v370 = vadd.f32 %v368, %v369
        %v373 = vsel %vm350, %v370, %v363
        %v375 = vadd.f32 %v356, %v373
        %376 = vst.msk [vmem:[#allocation3] sm:$0x3] %vm354, %v375
        %p377 = scmp.eq.s32.totalorder %s17, 2
        // Predicated region
        $region121: #{tpu_custom_call.1} parent=107 // pred_check
          %p378 = pneg %p377
        $region122: #{tpu_custom_call.1} parent=107 // pred_check_branch
          %380 = sbr.rel (%p378) target = $region124
        $region123: #{tpu_custom_call.1} parent=107 // pred_region
          %v381 = vld [vmem:[%s2] sm:$0x3]
          %vm382 = vcmask 25600
          %v383 = vsel %vm382, %v381, 0.0
          %384 = vadd.xlane.f32.xlu0 %v383
          %v385 = vpop.xlane.xlu0 %384
          %v386 = vrcp.pop %v385
          %v387 = vmul.f32 %v385, %v386
          %v388 = vsub.f32 1.0, %v387
          %v389 = vmul.f32 %v386, %v388
          %v390 = vadd.f32 %v386, %v389
          %vm391 = vweird.f32 %v385
          %vm392 = vweird.f32 %v386
          %vm393 = vmor %vm391, %vm392
          %v394 = vsel %vm393, %v386, %v390
          %v395 = vand.u32 2147483647, %v385
          %vm396 = vcmp.eq.f32.partialorder %v395, 8.507059e+37
          %v397 = vand.u32 %v385, 2147483648
          %v398 = vor.u32 1.1754944e-38, %v397
          %v399 = vsel %vm396, %v398, %v394
          %v400 = vmul.f32 %v381, %v399
          %v401 = vld [vmem:[%s0] sm:$0x3]
          %v402 = vlog2.pop %v401
          %v403 = vmul.f32 %v402, 0.6931472
          %v404 = vmax.f32 %v403, -100.0
          %v405 = vsub.f32 1.0, %v401
          %v406 = vlog2.pop %v405
          %v407 = vmul.f32 %v406, 0.6931472
          %v408 = vmax.f32 %v407, -100.0
          %v409 = vmul.f32 %v400, %v404
          %v410 = vsub.f32 1.0, %v400
          %v411 = vmul.f32 %v410, %v408
          %v412 = vadd.f32 %v409, %v411
          %v413 = vsel %vm382, %v412, 0.0
          %414 = vadd.xlane.f32.xlu0 %v413
          %v415 = vpop.xlane.xlu0 %414
          %v416 = vrot.slane %v415, 4
          %v417 = vadd.f32 %v415, %v416
          %v418 = vrot.slane %v417, 2
          %v419 = vadd.f32 %v417, %v418
          %v420 = vrot.slane %v419, 1
          %v421 = vadd.f32 %v419, %v420
          %s422 = vtos %v421
          %v423 = vrcp.pop 8.0
          %v424 = vmul.f32 8.0, %v423
          %v425 = vsub.f32 1.0, %v424
          %v426 = vmul.f32 %v423, %v425
          %v427 = vadd.f32 %v423, %v426
          %vm428 = vweird.f32 %v423
          %v429 = vsel %vm428, %v423, %v427
          %s430 = vtos %v429
          %s431 = smul.f32 %s422, %s430
          %s432 = ssub.f32 0.0, %s431
          %v433 = vld [vmem:[%s1] sm:$0x3]
          %v434 = vlog2.pop %v433
          %v435 = vmul.f32 %v434, 0.6931472
          %v436 = vmax.f32 %v435, -100.0
          %v437 = vsub.f32 1.0, %v433
          %v438 = vlog2.pop %v437
          %v439 = vmul.f32 %v438, 0.6931472
          %v440 = vmax.f32 %v439, -100.0
          %v441 = vmul.f32 %v436, 0.25
          %v442 = vmul.f32 %v440, 0.75
          %v443 = vadd.f32 %v441, %v442
          %v444 = vsel %vm382, %v443, 0.0
          %445 = vadd.xlane.f32.xlu0 %v444
          %v446 = vpop.xlane.xlu0 %445
          %v447 = vrot.slane %v446, 4
          %v448 = vadd.f32 %v446, %v447
          %v449 = vrot.slane %v448, 2
          %v450 = vadd.f32 %v448, %v449
          %v451 = vrot.slane %v450, 1
          %v452 = vadd.f32 %v450, %v451
          %s453 = vtos %v452
          %v454 = vrcp.pop 8.0
          %v455 = vmul.f32 8.0, %v454
          %v456 = vsub.f32 1.0, %v455
          %v457 = vmul.f32 %v454, %v456
          %v458 = vadd.f32 %v454, %v457
          %vm459 = vweird.f32 %v454
          %v460 = vsel %vm459, %v454, %v458
          %s461 = vtos %v460
          %s462 = smul.f32 %s453, %s461
          %s463 = ssub.f32 0.0, %s462
          %v464 = vld [vmem:[#allocation2] sm:$0x3]
          %v465 = vmul.f32 %v464, 0.05
          %v466 = vld [vmem:[#allocation3] sm:$0x3]
          %v467 = vmul.f32 %v466, 0.05
          %v468 = vmul.f32 %v465, %v465
          %v469 = vsel %vm354, %v468, 0.0
          %470 = vadd.xlane.f32.xlu0 %v469
          %v471 = vpop.xlane.xlu0 %470
          %v472 = vrsqrt.pop %v471
          %v473 = vmul.f32 %v472, %v471
          %v474 = vmul.f32 %v473, %v472
          %v475 = vmul.f32 0.5, %v474
          %v476 = vsub.f32 1.5, %v475
          %v477 = vmul.f32 %v472, %v476
          %v478 = vmul.f32 %v471, %v477
          %vm479 = vcmp.eq.f32.partialorder %v471, inf
          %v480 = vsel %vm479, %v471, %v478
          %vm481 = vcmp.eq.f32.partialorder %v471, 0.0
          %v482 = vand.u32 %v471, 2147483648
          %v483 = vsel %vm481, %v482, %v480
          %v484 = vmul.f32 %v467, %v467
          %v485 = vsel %vm354, %v484, 0.0
          %486 = vadd.xlane.f32.xlu0 %v485
          %v487 = vpop.xlane.xlu0 %486
          %v488 = vrsqrt.pop %v487
          %v489 = vmul.f32 %v488, %v487
          %v490 = vmul.f32 %v489, %v488
          %v491 = vmul.f32 0.5, %v490
          %v492 = vsub.f32 1.5, %v491
          %v493 = vmul.f32 %v488, %v492
          %v494 = vmul.f32 %v487, %v493
          %vm495 = vcmp.eq.f32.partialorder %v487, inf
          %v496 = vsel %vm495, %v487, %v494
          %vm497 = vcmp.eq.f32.partialorder %v487, 0.0
          %v498 = vand.u32 %v487, 2147483648
          %v499 = vsel %vm497, %v498, %v496
          %v500 = vsub.f32 100.0, %v483
          %v501 = vmax.f32 %v500, 0.0
          %v502 = vadd.f32 %v501, %v499
          %v503 = vmul.f32 %v502, %v502
          %vm504 = vcmask 1024
          %v505 = vsel %vm504, %v503, 0.0
          %506 = vadd.xlane.f32.xlu0 %v505
          %v507 = vpop.xlane.xlu0 %506
          %v508 = vrot.slane %v507, 4
          %v509 = vadd.f32 %v507, %v508
          %v510 = vrot.slane %v509, 2
          %v511 = vadd.f32 %v509, %v510
          %v512 = vrot.slane %v511, 1
          %v513 = vadd.f32 %v511, %v512
          %s514 = vtos %v513
          %s515 = smul.f32 %s514, 0.5
          %s516 = smul.f32 %s515, 0.0005
          %s517 = sadd.f32 %s432, %s516
          %s518 = smul.f32 %s463, 0.2
          %s519 = sadd.f32 %s517, %s518
          %s520 = scalar_lea.smem [#allocation6], 0
          %521 = sst [smem:[%s520]] %s432
          %s522 = scalar_lea.smem [#allocation6], 1
          %523 = sst [smem:[%s522]] %s463
          %s524 = scalar_lea.smem [#allocation6], 2
          %525 = sst [smem:[%s524]] %s515
          %s526 = scalar_lea.smem [#allocation6], 3
          %527 = sst [smem:[%s526]] %s519
        $region124: #{tpu_custom_call.1} parent=107 // pred_fallthru
          _
        // Predicated region
        $region125: #{tpu_custom_call.1} parent=107 // pred_check
          %p528 = pneg %p145
        $region126: #{tpu_custom_call.1} parent=107 // pred_check_branch
          %530 = sbr.rel (%p528) target = $region128
        $region127: #{tpu_custom_call.1} parent=107 // pred_region
          %532 = vsyncadd [#allocation7], 0
          %s534 = sshll.u32 %s5, 4
          %s535 = int_to_ptr.hbm [resolvable:$true] %s534
          %537 = dma.smem_to_hbm [#allocation6], 16, %s535, [#allocation7]
        $region128: #{tpu_custom_call.1} parent=107 // pred_fallthru
          _
        // Predicated region
        $region129: #{tpu_custom_call.1} parent=107 // pred_check
          %p538 = pneg %p145
        $region130: #{tpu_custom_call.1} parent=107 // pred_check_branch
          %540 = sbr.rel (%p538) target = $region132
        $region131: #{tpu_custom_call.1} parent=107 // pred_region
          %542 = dma.done [#allocation7], 16
        $region132: #{tpu_custom_call.1} parent=107 // pred_fallthru
          _
        %543 = sfence
      $region108: #{tpu_custom_call.1} parent=5 // pred_fallthru
        _
      %p544 = scmp.le.s32.totalorder 2, %s12
      // Predicated region
      $region133: #{tpu_custom_call.1} parent=5 // pred_check
        %p545 = pneg %p544
      $region134: #{tpu_custom_call.1} parent=5 // pred_check_branch
        %547 = sbr.rel (%p545) target = $region136
      $region135: #{tpu_custom_call.1} parent=5 // pred_region
        %s548 = ssub.s32 %s12, 2
      $region136: #{tpu_custom_call.1} parent=5 // pred_fallthru
        _
    $region6: #{tpu_custom_call.1} parent=1 // loop_footer
      %s16 = sadd.s32 1, %s12
    $region7: #{tpu_custom_call.1} parent=1 // loop_footer_branch
      %11 = sbr.rel target = $region3
    $region8: #{tpu_custom_call.1} parent=1 // loop_exit
      _
    %549 = vsyncpa [#allocation7], 1
    %s550 = scalar_lea.sflag [#allocation7], 1
    %551 = vsyncpa %s550, 1

</llo_original>
